<compile_context>
chip_gen: v7x
topology: tpu7x:2x2x1
jax: 0.10.0
libtpu: 0.0.40
codegen_flags: <defaults>
</compile_context>

<pallas_src>
import functools
import math

import jax
import jax.numpy as jnp
from jax.experimental import pallas as pl
from jax.experimental.pallas import tpu as pltpu

F32 = jnp.float32
NEG_SLOPE = 0.01                     # LeakyReLU(0.01)


def _round_up(n, m):
    return pl.cdiv(n, m) * m


def _vmem_capacity_bytes():
    try:
        return int(pltpu.get_tpu_info().vmem_capacity_bytes)
    except Exception:
        return 64 * 1024 * 1024      # conservative default (v7x per-core VMEM)


def _vmem_limit_bytes():
    # ~100 MiB on v5e/v6e (128 MiB physical), ~56 MiB on v7x (64 MiB physical).
    return int(min(7 * _vmem_capacity_bytes() // 8, 100 * 1024 * 1024))


# ----------------------------------------------------------------------------
# Fully fused kernel: features() + W2 @ W1 in a single pallas_call.
# ----------------------------------------------------------------------------
def _fused_kernel(x_ref, w1t_ref, b1_ref, w2t_ref, b2_ref, w2_ref, w1_ref,
                  feat_ref, wprod_ref, *, slope):
    # features(): two MXU matmuls; bias + LeakyReLU fused in the epilogue;
    # the hidden activation never leaves VMEM.
    h = jnp.dot(x_ref[...], w1t_ref[...], preferred_element_type=jnp.float32)
    h = h + b1_ref[...]
    h = jnp.where(h >= 0, h, slope * h)
    y = jnp.dot(h, w2t_ref[...], preferred_element_type=jnp.float32)
    y = y + b2_ref[...]
    y = jnp.where(y >= 0, y, slope * y)
    feat_ref[...] = y.astype(feat_ref.dtype)
    # This program's row-slice of W2 @ W1 (lane-dense (tw, fea_n) output).
    wprod_ref[...] = jnp.dot(
        w2_ref[...], w1_ref[...],
        preferred_element_type=jnp.float32).astype(wprod_ref.dtype)


def _fused_plan(M, K, H):
    """Tile sizes + VMEM estimate for the fused kernel. K = fea_n, H = fea_n//2."""
    # Row tile: keep >=2 programs whenever M allows so the single "parallel"
    # axis can shard across v7x's two TensorCores.  No host padding: Pallas
    # masks the ragged last block; K/H (contraction dims) are never padded.
    tm = max(8, min(512, _round_up(pl.cdiv(M, 2), 8)))
    G = pl.cdiv(M, tm)
    # Row tile of W2 for the fused weight product, spread over the same grid
    # so each program owns a disjoint slice of that output too.
    tw = _round_up(pl.cdiv(H, G), 8)
    n_wb = pl.cdiv(H, tw)                      # distinct W-product blocks (<= G)
    # VMEM working set (default pipeline double-buffers every operand).
    resident = K * H + H * H + 2 * H + H * K   # W1^T, W2^T, b1, b2, raw W1
    per_step = tm * K + tm * H + tw * H + tw * K
    live = 2 * tm * H                          # hidden h / y temporaries
    vmem_bytes = 4 * (2 * resident + 2 * per_step + live)
    return tm, G, tw, n_wb, vmem_bytes


def _fused_forward(x, params, vmem_limit, tm, G, tw, n_wb):
    M, K = x.shape
    H = params["w1"].shape[0]
    w1, b1, w2, b2 = params["w1"], params["b1"], params["w2"], params["b2"]
    w1t, w2t = params["w1_t"], params["w2_t"]

    if n_wb == G:
        w_idx = lambda i: (i, 0)
    else:
        # More programs than W-product blocks: the extra programs recompute and
        # rewrite the last block with identical values (idempotent, so the
        # "parallel" axis stays safe even when split across cores).
        w_idx = lambda i: (jnp.minimum(i, n_wb - 1), 0)

    flops = 2 * M * K * H + 2 * M * H * H + 2 * H * H * K
    bytes_accessed = 4 * (M * K + M * H + 2 * K * H + 2 * H * H + 2 * H + H * K)

    feats, wprod = pl.pallas_call(
        functools.partial(_fused_kernel, slope=NEG_SLOPE),
        out_shape=(jax.ShapeDtypeStruct((M, H), F32),      # features
                   jax.ShapeDtypeStruct((H, K), F32)),      # W2 @ W1
        grid_spec=pltpu.PrefetchScalarGridSpec(
            num_scalar_prefetch=0,
            grid=(G,),
            in_specs=[
                pl.BlockSpec((tm, K), lambda i: (i, 0)),    # x row tile
                pl.BlockSpec((K, H), lambda i: (0, 0)),     # W1^T  (resident)
                pl.BlockSpec((1, H), lambda i: (0, 0)),     # b1    (resident)
                pl.BlockSpec((H, H), lambda i: (0, 0)),     # W2^T  (resident)
                pl.BlockSpec((1, H), lambda i: (0, 0)),     # b2    (resident)
                pl.BlockSpec((tw, H), w_idx),               # W2 row slice
                pl.BlockSpec((H, K), lambda i: (0, 0)),     # W1    (resident)
            ],
            out_specs=(pl.BlockSpec((tm, H), lambda i: (i, 0)),
                       pl.BlockSpec((tw, K), w_idx)),
        ),
        compiler_params=pltpu.CompilerParams(
            dimension_semantics=("parallel",),
            vmem_limit_bytes=vmem_limit),
        cost_estimate=pl.CostEstimate(flops=flops, transcendentals=0,
                                      bytes_accessed=bytes_accessed),
    )(x.astype(F32), w1t, b1.reshape(1, H), w2t, b2.reshape(1, H), w2, w1)
    return feats, wprod


# ----------------------------------------------------------------------------
# Fallback: general tiled matmul with fused bias / LeakyReLU epilogue.
# K (contraction) stays a single full-extent block (never padded); no host
# padding or output slicing -- ragged edge blocks are masked by Pallas.
# ----------------------------------------------------------------------------
def _linear_kernel(*refs, slope, has_bias):
    if has_bias:
        x_ref, w_ref, b_ref, o_ref = refs
    else:
        x_ref, w_ref, o_ref = refs
    y = jnp.dot(x_ref[...], w_ref[...], preferred_element_type=jnp.float32)
    if has_bias:
        y = y + b_ref[...]
    if slope is not None:
        y = jnp.where(y >= 0, y, slope * y)
    o_ref[...] = y.astype(o_ref.dtype)


def fused_linear(x, w, b=None, negative_slope=None, vmem_limit=None,
                 tm=256, tn=256):
    """out = act(x @ w + b);  x: (M, K), w: (K, N), b: (N,) or None."""
    M, K = x.shape
    Kw, N = w.shape
    assert K == Kw
    has_bias = b is not None
    if vmem_limit is None:
        vmem_limit = _vmem_limit_bytes()

    tm = min(tm, _round_up(M, 8))
    tn = min(tn, _round_up(N, 128))

    def est(tm_, tn_):
        return 4 * (2 * (tm_ * K + K * tn_ + tn_ + tm_ * tn_) + tm_ * tn_)

    budget = (3 * vmem_limit) // 5
    while est(tm, tn) > budget:
        if tm > 8 and (tm >= tn or tn <= 128):
            tm = max(8, tm // 2)
        elif tn > 128:
            tn = max(128, tn // 2)
        else:
            break

    grid = (pl.cdiv(M, tm), pl.cdiv(N, tn))
    in_specs = [pl.BlockSpec((tm, K), lambda i, j: (i, 0)),
                pl.BlockSpec((K, tn), lambda i, j: (0, j))]
    args = [x.astype(F32), w.astype(F32)]
    if has_bias:
        in_specs.append(pl.BlockSpec((1, tn), lambda i, j: (0, j)))
        args.append(b.astype(F32).reshape(1, N))

    flops = 2 * M * K * N
    bytes_accessed = 4 * (M * K + K * N + M * N + (N if has_bias else 0))

    return pl.pallas_call(
        functools.partial(_linear_kernel, slope=negative_slope,
                          has_bias=has_bias),
        out_shape=jax.ShapeDtypeStruct((M, N), F32),
        grid_spec=pltpu.PrefetchScalarGridSpec(
            num_scalar_prefetch=0,
            grid=grid,
            in_specs=in_specs,
            out_specs=pl.BlockSpec((tm, tn), lambda i, j: (i, j)),
        ),
        compiler_params=pltpu.CompilerParams(
            dimension_semantics=("parallel", "parallel"),
            vmem_limit_bytes=vmem_limit),
        cost_estimate=pl.CostEstimate(flops=flops, transcendentals=0,
                                      bytes_accessed=bytes_accessed),
    )(*args)


# ----------------------------------------------------------------------------
# Parameters (deterministic, PyTorch nn.Linear-style init) and forward
# ----------------------------------------------------------------------------
def make_params(key, fea_n):
    h = fea_n // 2
    k1, k2, k3, k4 = jax.random.split(key, 4)
    bound1 = 1.0 / math.sqrt(fea_n)
    bound2 = 1.0 / math.sqrt(h)
    w1 = jax.random.uniform(k1, (h, fea_n), F32, -bound1, bound1)  # (out, in)
    b1 = jax.random.uniform(k2, (h,), F32, -bound1, bound1)
    w2 = jax.random.uniform(k3, (h, h), F32, -bound2, bound2)
    b2 = jax.random.uniform(k4, (h,), F32, -bound2, bound2)
    # Pre-transposed copies built once here so the forward pass never emits a
    # runtime transpose of the weights.
    return dict(w1=w1, b1=b1, w2=w2, b2=b2, w1_t=w1.T, w2_t=w2.T)


def fea_process_forward(x, params):
    """Returns (features, W2 @ W1) matching feaProcess.forward (eval mode)."""
    w1, b1, w2, b2 = params["w1"], params["b1"], params["w2"], params["b2"]
    H, K = w1.shape                     # H = fea_n // 2, K = fea_n
    M = x.shape[0]
    vmem_limit = _vmem_limit_bytes()
    tm, G, tw, n_wb, need = _fused_plan(M, K, H)
    if need <= (3 * vmem_limit) // 5:   # headroom for compiler temporaries
        return _fused_forward(x, params, vmem_limit, tm, G, tw, n_wb)
    # Weights too large to keep resident in VMEM: tiled fallback path.
    y = fused_linear(x, params["w1_t"], b1, negative_slope=NEG_SLOPE,
                     vmem_limit=vmem_limit)
    y = fused_linear(y, params["w2_t"], b2, negative_slope=NEG_SLOPE,
                     vmem_limit=vmem_limit)
    w = fused_linear(w2, w1, None, vmem_limit=vmem_limit)   # no dummy bias
    return y, w


def _ref_forward(x, params):
    hp = jax.lax.Precision.HIGHEST
    def lrelu(v):
        return jnp.where(v >= 0, v, NEG_SLOPE * v)
    y = lrelu(jnp.dot(x, params["w1"].T, precision=hp) + params["b1"])
    y = lrelu(jnp.dot(y, params["w2"].T, precision=hp) + params["b2"])
    w = jnp.dot(params["w2"], params["w1"], precision=hp)
    return y, w


if __name__ == "__main__":
    B, fea_n = 8, 256                       # hidden = fea_n // 2 = 128
    key = jax.random.PRNGKey(0)
    kparam, kin = jax.random.split(key)
    params = make_params(kparam, fea_n)
    x = jax.random.normal(kin, (B, fea_n), F32)

    feats, wprod = fea_process_forward(x, params)
    feats = jax.block_until_ready(feats)
    wprod = jax.block_until_ready(wprod)

    assert feats.shape == (B, fea_n // 2), feats.shape
    assert wprod.shape == (fea_n // 2, fea_n), wprod.shape

    # Numerical sanity check against a pure-JAX reference.
    ref_feats, ref_w = _ref_forward(x, params)
    err_f = float(jnp.max(jnp.abs(feats - ref_feats)))
    err_w = float(jnp.max(jnp.abs(wprod - ref_w)))
    assert err_f < 5e-3 and err_w < 5e-3, (err_f, err_w)

    print("KERNEL_OK")
</pallas_src>

<mosaic_0001>
module attributes {stable_mosaic.version = 11 : i64} {
  func.func @_fused_kernel(%arg0: i32, %arg1: memref<8x256xf32, #tpu.memory_space<vmem>>, %arg2: memref<256x128xf32, #tpu.memory_space<vmem>>, %arg3: memref<1x128xf32, #tpu.memory_space<vmem>>, %arg4: memref<128x128xf32, #tpu.memory_space<vmem>>, %arg5: memref<1x128xf32, #tpu.memory_space<vmem>>, %arg6: memref<128x128xf32, #tpu.memory_space<vmem>>, %arg7: memref<128x256xf32, #tpu.memory_space<vmem>>, %arg8: memref<8x128xf32, #tpu.memory_space<vmem>>, %arg9: memref<128x256xf32, #tpu.memory_space<vmem>>) attributes {dimension_semantics = [#tpu.dimension_semantics<parallel>], iteration_bounds = array<i64: 1>, scalar_prefetch = 0 : i64, scratch_operands = 0 : i64, tpu.core_type = #tpu.core_type<tc>, window_params = [{transform_indices = @transform_0, window_bounds = array<i64: 8, 256>}, {pipeline_mode = #tpu.pipeline_mode<synchronous>, transform_indices = @transform_1, window_bounds = array<i64: 256, 128>}, {pipeline_mode = #tpu.pipeline_mode<synchronous>, transform_indices = @transform_2, window_bounds = array<i64: 1, 128>}, {pipeline_mode = #tpu.pipeline_mode<synchronous>, transform_indices = @transform_3, window_bounds = array<i64: 128, 128>}, {pipeline_mode = #tpu.pipeline_mode<synchronous>, transform_indices = @transform_4, window_bounds = array<i64: 1, 128>}, {transform_indices = @transform_5, window_bounds = array<i64: 128, 128>}, {pipeline_mode = #tpu.pipeline_mode<synchronous>, transform_indices = @transform_6, window_bounds = array<i64: 128, 256>}, {transform_indices = @transform_7, window_bounds = array<i64: 8, 128>}, {transform_indices = @transform_8, window_bounds = array<i64: 128, 256>}]} {
    %c0 = arith.constant 0 : index
    %c0_0 = arith.constant 0 : index
    %0 = vector.load %arg1[%c0, %c0_0] : memref<8x256xf32, #tpu.memory_space<vmem>>, vector<8x256xf32>
    %c0_1 = arith.constant 0 : index
    %c0_2 = arith.constant 0 : index
    %1 = vector.load %arg2[%c0_1, %c0_2] : memref<256x128xf32, #tpu.memory_space<vmem>>, vector<256x128xf32>
    %cst = arith.constant dense<0.000000e+00> : vector<8x128xf32>
    %2 = tpu.matmul %0, %1, %cst {dimension_numbers = #tpu.dot_dimension_numbers<[1], [0], [0], [1], [0, 0, 1, 1], [], []>} : vector<8x256xf32>, vector<256x128xf32>, vector<8x128xf32> -> vector<8x128xf32>
    %c0_3 = arith.constant 0 : index
    %c0_4 = arith.constant 0 : index
    %3 = vector.load %arg3[%c0_3, %c0_4] : memref<1x128xf32, #tpu.memory_space<vmem>>, vector<1x128xf32>
    %4 = vector.broadcast %3 : vector<1x128xf32> to vector<8x128xf32>
    %5 = arith.addf %2, %4 : vector<8x128xf32>
    %cst_5 = arith.constant 0.000000e+00 : f32
    %6 = vector.broadcast %cst_5 : f32 to vector<8x128xf32>
    %7 = arith.cmpf oge, %5, %6 : vector<8x128xf32>
    %cst_6 = arith.constant 0.00999999977 : f32
    %8 = vector.broadcast %cst_6 : f32 to vector<8x128xf32>
    %9 = arith.mulf %8, %5 : vector<8x128xf32>
    %10 = arith.select %7, %5, %9 : vector<8x128xi1>, vector<8x128xf32>
    %c0_7 = arith.constant 0 : index
    %c0_8 = arith.constant 0 : index
    %11 = vector.load %arg4[%c0_7, %c0_8] : memref<128x128xf32, #tpu.memory_space<vmem>>, vector<128x128xf32>
    %cst_9 = arith.constant dense<0.000000e+00> : vector<8x128xf32>
    %12 = tpu.matmul %10, %11, %cst_9 {dimension_numbers = #tpu.dot_dimension_numbers<[1], [0], [0], [1], [0, 0, 1, 1], [], []>} : vector<8x128xf32>, vector<128x128xf32>, vector<8x128xf32> -> vector<8x128xf32>
    %c0_10 = arith.constant 0 : index
    %c0_11 = arith.constant 0 : index
    %13 = vector.load %arg5[%c0_10, %c0_11] : memref<1x128xf32, #tpu.memory_space<vmem>>, vector<1x128xf32>
    %14 = vector.broadcast %13 : vector<1x128xf32> to vector<8x128xf32>
    %15 = arith.addf %12, %14 : vector<8x128xf32>
    %cst_12 = arith.constant 0.000000e+00 : f32
    %16 = vector.broadcast %cst_12 : f32 to vector<8x128xf32>
    %17 = arith.cmpf oge, %15, %16 : vector<8x128xf32>
    %cst_13 = arith.constant 0.00999999977 : f32
    %18 = vector.broadcast %cst_13 : f32 to vector<8x128xf32>
    %19 = arith.mulf %18, %15 : vector<8x128xf32>
    %20 = arith.select %17, %15, %19 : vector<8x128xi1>, vector<8x128xf32>
    %c0_14 = arith.constant 0 : index
    %c0_15 = arith.constant 0 : index
    %21 = vector.load %arg8[%c0_14, %c0_15] : memref<8x128xf32, #tpu.memory_space<vmem>>, vector<8x128xf32>
    tpu.vector_store %arg8[%c0_14, %c0_15], %20 {strides = array<i32>} : memref<8x128xf32, #tpu.memory_space<vmem>>, vector<8x128xf32>,
    %c0_16 = arith.constant 0 : index
    %c0_17 = arith.constant 0 : index
    %22 = vector.load %arg6[%c0_16, %c0_17] : memref<128x128xf32, #tpu.memory_space<vmem>>, vector<128x128xf32>
    %c0_18 = arith.constant 0 : index
    %c0_19 = arith.constant 0 : index
    %23 = vector.load %arg7[%c0_18, %c0_19] : memref<128x256xf32, #tpu.memory_space<vmem>>, vector<128x256xf32>
    %cst_20 = arith.constant dense<0.000000e+00> : vector<128x256xf32>
    %24 = tpu.matmul %22, %23, %cst_20 {dimension_numbers = #tpu.dot_dimension_numbers<[1], [0], [0], [1], [0, 0, 1, 1], [], []>} : vector<128x128xf32>, vector<128x256xf32>, vector<128x256xf32> -> vector<128x256xf32>
    %c0_21 = arith.constant 0 : index
    %c0_22 = arith.constant 0 : index
    %25 = vector.load %arg9[%c0_21, %c0_22] : memref<128x256xf32, #tpu.memory_space<vmem>>, vector<128x256xf32>
    tpu.vector_store %arg9[%c0_21, %c0_22], %24 {strides = array<i32>} : memref<128x256xf32, #tpu.memory_space<vmem>>, vector<128x256xf32>,
    return
  }
  func.func @transform_0(%arg0: i32) -> (i32, i32) {
    %c0_i32 = arith.constant 0 : i32
    %c0_i32_0 = arith.constant 0 : i32
    return %arg0, %c0_i32 : i32, i32
  }
  func.func @transform_1(%arg0: i32) -> (i32, i32) {
    %c0_i32 = arith.constant 0 : i32
    %c0_i32_0 = arith.constant 0 : i32
    %c0_i32_1 = arith.constant 0 : i32
    return %c0_i32, %c0_i32_0 : i32, i32
  }
  func.func @transform_2(%arg0: i32) -> (i32, i32) {
    %c0_i32 = arith.constant 0 : i32
    %c0_i32_0 = arith.constant 0 : i32
    %c0_i32_1 = arith.constant 0 : i32
    return %c0_i32, %c0_i32_0 : i32, i32
  }
  func.func @transform_3(%arg0: i32) -> (i32, i32) {
    %c0_i32 = arith.constant 0 : i32
    %c0_i32_0 = arith.constant 0 : i32
    %c0_i32_1 = arith.constant 0 : i32
    return %c0_i32, %c0_i32_0 : i32, i32
  }
  func.func @transform_4(%arg0: i32) -> (i32, i32) {
    %c0_i32 = arith.constant 0 : i32
    %c0_i32_0 = arith.constant 0 : i32
    %c0_i32_1 = arith.constant 0 : i32
    return %c0_i32, %c0_i32_0 : i32, i32
  }
  func.func @transform_5(%arg0: i32) -> (i32, i32) {
    %c0_i32 = arith.constant 0 : i32
    %c0_i32_0 = arith.constant 0 : i32
    return %arg0, %c0_i32 : i32, i32
  }
  func.func @transform_6(%arg0: i32) -> (i32, i32) {
    %c0_i32 = arith.constant 0 : i32
    %c0_i32_0 = arith.constant 0 : i32
    %c0_i32_1 = arith.constant 0 : i32
    return %c0_i32, %c0_i32_0 : i32, i32
  }
  func.func @transform_7(%arg0: i32) -> (i32, i32) {
    %c0_i32 = arith.constant 0 : i32
    %c0_i32_0 = arith.constant 0 : i32
    return %arg0, %c0_i32 : i32, i32
  }
  func.func @transform_8(%arg0: i32) -> (i32, i32) {
    %c0_i32 = arith.constant 0 : i32
    %c0_i32_0 = arith.constant 0 : i32
    return %arg0, %c0_i32 : i32, i32
  }
}

</mosaic_0001>

<llo_original>
// kernel: tpu_custom_call.1
$region0: #{tpu_custom_call.1}
  #allocation0 [shape = 'u32[]', space=smem, size = 0x4, offset = 0x4, fixed_abs, tag = 'smem constant byte address 0x4 - core index']
  #allocation1 [shape = 'u32[144,128]{1,0:T(1,128)}', space=vmem, size = 0x12000, scoped, tag = 'internal scratch']
  %s0 = inlined_call_operand.hbm [shape: f32[8,256], index: 0, kind: input, shape index: {}]
  %s1 = inlined_call_operand.hbm [shape: f32[256,128], index: 1, kind: input, shape index: {}]
  %s2 = inlined_call_operand.vmem [shape: f32[1,128], index: 2, kind: input, shape index: {}]
  %s3 = inlined_call_operand.hbm [shape: f32[128,128], index: 3, kind: input, shape index: {}]
  %s4 = inlined_call_operand.vmem [shape: f32[1,128], index: 4, kind: input, shape index: {}]
  %s5 = inlined_call_operand.hbm [shape: f32[128,128], index: 5, kind: input, shape index: {}]
  %s6 = inlined_call_operand.hbm [shape: f32[128,256], index: 6, kind: input, shape index: {}]
  %s7 = inlined_call_operand.hbm [shape: f32[8,128], index: 7, kind: output, shape index: {0}]
  %s8 = inlined_call_operand.hbm [shape: f32[128,256], index: 8, kind: output, shape index: {1}]
  %9 = xla_tuple %s7, %s8
  %s10 = sld [smem:[#allocation0]]
  $region66: #{tpu_custom_call.1} parent=0
    _
  %s12 = ssub.s32 1, %s10
  %s13 = scalar_select 0, %s12, %s10
  $region1: #{tpu_custom_call.1} parent=0
    #allocation2 [shape = 'u8[8192]{0}', space=vmem, size = 0x2000, scoped, tag = 'input window, operand 0, single buffered']
    #allocation3 [shape = 's32[1]{0}', space=sflag, size = 0x4, scoped, tag = 'scoped memory for tpu_custom_call.1']
    #allocation4 [shape = 's32[1]{0}', space=sflag, size = 0x4, scoped, tag = 'scoped memory for tpu_custom_call.1']
    #allocation5 [shape = 'u8[131072]{0}', space=vmem, size = 0x20000, scoped, tag = 'input window, operand 1, single buffered']
    #allocation6 [shape = 's32[1]{0}', space=sflag, size = 0x4, scoped, tag = 'scoped memory for tpu_custom_call.1']
    #allocation7 [shape = 'u8[65536]{0}', space=vmem, size = 0x10000, scoped, tag = 'input window, operand 3, single buffered']
    #allocation8 [shape = 'u8[65536]{0}', space=vmem, size = 0x10000, scoped, tag = 'input window, operand 5, single buffered']
    #allocation9 [shape = 's32[1]{0}', space=sflag, size = 0x4, scoped, tag = 'scoped memory for tpu_custom_call.1']
    #allocation10 [shape = 'u8[131072]{0}', space=vmem, size = 0x20000, scoped, tag = 'input window, operand 6, single buffered']
    #allocation11 [shape = 'u8[4096]{0}', space=vmem, size = 0x1000, scoped, tag = 'output window, operand 0, single buffered']
    #allocation12 [shape = 'u8[131072]{0}', space=vmem, size = 0x20000, scoped, tag = 'output window, operand 1, single buffered']
    #allocation13 [shape = 's32[1]{0}', space=sflag, size = 0x4, scoped, tag = 'scoped memory for tpu_custom_call.1']
    %14 = vsyncpa [#allocation3], 0
    %15 = vsyncpa [#allocation6], 0
    %16 = vsyncpa [#allocation9], 0
    %17 = vsyncpa [#allocation4], 0
    %18 = vsyncpa [#allocation13], 0
    // Predicated region
    $region2: #{tpu_custom_call.1} parent=1 // pred_check
      _
    $region3: #{tpu_custom_call.1} parent=1 // pred_check_branch
      %20 = sbr.rel (0) target = $region5
    $region4: #{tpu_custom_call.1} parent=1 // pred_region
      %s22 = ssub.s32 256, 256
      %23 = vsyncadd [#allocation3], %s22
      %s25 = sshll.u32 [#allocation2], 4
      %s26 = int_to_ptr.vmem [resolvable:$true] %s25
      %28 = dma.hbm_to_vmem [thread:$0]  %s0, 256, %s26, [#allocation3]
    $region5: #{tpu_custom_call.1} parent=1 // pred_fallthru
      _
    // Predicated region
    $region6: #{tpu_custom_call.1} parent=1 // pred_check
      _
    $region7: #{tpu_custom_call.1} parent=1 // pred_check_branch
      %30 = sbr.rel (0) target = $region9
    $region8: #{tpu_custom_call.1} parent=1 // pred_region
      %s32 = ssub.s32 4096, 4096
      %33 = vsyncadd [#allocation6], %s32
      %s34 = sshll.u32 [#allocation5], 4
      %s35 = int_to_ptr.vmem [resolvable:$true] %s34
      %40 = dma.hbm_to_vmem [thread:$0]  %s1, 4096, %s35, [#allocation6], 128, 128, 8
    $region9: #{tpu_custom_call.1} parent=1 // pred_fallthru
      _
    // Predicated region
    $region10: #{tpu_custom_call.1} parent=1 // pred_check
      _
    $region11: #{tpu_custom_call.1} parent=1 // pred_check_branch
      %42 = sbr.rel (0) target = $region13
    $region12: #{tpu_custom_call.1} parent=1 // pred_region
      _
    $region13: #{tpu_custom_call.1} parent=1 // pred_fallthru
      _
    // Predicated region
    $region14: #{tpu_custom_call.1} parent=1 // pred_check
      _
    $region15: #{tpu_custom_call.1} parent=1 // pred_check_branch
      %44 = sbr.rel (0) target = $region17
    $region16: #{tpu_custom_call.1} parent=1 // pred_region
      %s46 = ssub.s32 2048, 2048
      %47 = vsyncadd [#allocation6], %s46
      %s48 = sshll.u32 [#allocation7], 4
      %s49 = int_to_ptr.vmem [resolvable:$true] %s48
      %54 = dma.hbm_to_vmem [thread:$0]  %s3, 2048, %s49, [#allocation6], 128, 128, 8
    $region17: #{tpu_custom_call.1} parent=1 // pred_fallthru
      _
    // Predicated region
    $region18: #{tpu_custom_call.1} parent=1 // pred_check
      _
    $region19: #{tpu_custom_call.1} parent=1 // pred_check_branch
      %56 = sbr.rel (0) target = $region21
    $region20: #{tpu_custom_call.1} parent=1 // pred_region
      _
    $region21: #{tpu_custom_call.1} parent=1 // pred_fallthru
      _
    // Predicated region
    $region22: #{tpu_custom_call.1} parent=1 // pred_check
      _
    $region23: #{tpu_custom_call.1} parent=1 // pred_check_branch
      %58 = sbr.rel (0) target = $region25
    $region24: #{tpu_custom_call.1} parent=1 // pred_region
      %s60 = ssub.s32 2048, 2048
      %61 = vsyncadd [#allocation9], %s60
      %s62 = sshll.u32 [#allocation8], 4
      %s63 = int_to_ptr.vmem [resolvable:$true] %s62
      %68 = dma.hbm_to_vmem [thread:$0]  %s5, 2048, %s63, [#allocation9], 128, 128, 8
    $region25: #{tpu_custom_call.1} parent=1 // pred_fallthru
      _
    // Predicated region
    $region26: #{tpu_custom_call.1} parent=1 // pred_check
      _
    $region27: #{tpu_custom_call.1} parent=1 // pred_check_branch
      %70 = sbr.rel (0) target = $region29
    $region28: #{tpu_custom_call.1} parent=1 // pred_region
      %s72 = ssub.s32 4096, 4096
      %73 = vsyncadd [#allocation9], %s72
      %s74 = sshll.u32 [#allocation10], 4
      %s75 = int_to_ptr.vmem [resolvable:$true] %s74
      %80 = dma.hbm_to_vmem [thread:$0]  %s6, 4096, %s75, [#allocation9], 256, 256, 16
    $region29: #{tpu_custom_call.1} parent=1 // pred_fallthru
      _
    // Predicated region
    $region30: #{tpu_custom_call.1} parent=1 // pred_check
      _
    $region31: #{tpu_custom_call.1} parent=1 // pred_check_branch
      %82 = sbr.rel (0) target = $region33
    $region32: #{tpu_custom_call.1} parent=1 // pred_region
      %83 = dma.done [#allocation3], 256
    $region33: #{tpu_custom_call.1} parent=1 // pred_fallthru
      _
    // Predicated region
    $region34: #{tpu_custom_call.1} parent=1 // pred_check
      _
    $region35: #{tpu_custom_call.1} parent=1 // pred_check_branch
      %85 = sbr.rel (0) target = $region37
    $region36: #{tpu_custom_call.1} parent=1 // pred_region
      %86 = dma.done [#allocation6], 4096
    $region37: #{tpu_custom_call.1} parent=1 // pred_fallthru
      _
    // Predicated region
    $region38: #{tpu_custom_call.1} parent=1 // pred_check
      _
    $region39: #{tpu_custom_call.1} parent=1 // pred_check_branch
      %88 = sbr.rel (0) target = $region41
    $region40: #{tpu_custom_call.1} parent=1 // pred_region
      %89 = dma.done [#allocation6], 2048
    $region41: #{tpu_custom_call.1} parent=1 // pred_fallthru
      _
    // Predicated region
    $region42: #{tpu_custom_call.1} parent=1 // pred_check
      _
    $region43: #{tpu_custom_call.1} parent=1 // pred_check_branch
      %91 = sbr.rel (0) target = $region45
    $region44: #{tpu_custom_call.1} parent=1 // pred_region
      %92 = dma.done [#allocation9], 2048
    $region45: #{tpu_custom_call.1} parent=1 // pred_fallthru
      _
    // Predicated region
    $region46: #{tpu_custom_call.1} parent=1 // pred_check
      _
    $region47: #{tpu_custom_call.1} parent=1 // pred_check_branch
      %94 = sbr.rel (0) target = $region49
    $region48: #{tpu_custom_call.1} parent=1 // pred_region
      %95 = dma.done [#allocation9], 4096
    $region49: #{tpu_custom_call.1} parent=1 // pred_fallthru
      _
    %v96 = vld [vmem:[#allocation2] sm:$0xff]
    %v97 = vld [vmem:[#allocation2 + $0x8] sm:$0xff]
    %v98 = vld [vmem:[#allocation5] sm:$0xff]
    %v99 = vld [vmem:[#allocation5 + $0x8] sm:$0xff]
    %v100 = vld [vmem:[#allocation5 + $0x10] sm:$0xff]
    %v101 = vld [vmem:[#allocation5 + $0x18] sm:$0xff]
    %v102 = vld [vmem:[#allocation5 + $0x20] sm:$0xff]
    %v103 = vld [vmem:[#allocation5 + $0x28] sm:$0xff]
    %v104 = vld [vmem:[#allocation5 + $0x30] sm:$0xff]
    %v105 = vld [vmem:[#allocation5 + $0x38] sm:$0xff]
    %v106 = vld [vmem:[#allocation5 + $0x40] sm:$0xff]
    %v107 = vld [vmem:[#allocation5 + $0x48] sm:$0xff]
    %v108 = vld [vmem:[#allocation5 + $0x50] sm:$0xff]
    %v109 = vld [vmem:[#allocation5 + $0x58] sm:$0xff]
    %v110 = vld [vmem:[#allocation5 + $0x60] sm:$0xff]
    %v111 = vld [vmem:[#allocation5 + $0x68] sm:$0xff]
    %v112 = vld [vmem:[#allocation5 + $0x70] sm:$0xff]
    %v113 = vld [vmem:[#allocation5 + $0x78] sm:$0xff]
    %v114 = vld [vmem:[#allocation5 + $0x80] sm:$0xff]
    %v115 = vld [vmem:[#allocation5 + $0x88] sm:$0xff]
    %v116 = vld [vmem:[#allocation5 + $0x90] sm:$0xff]
    %v117 = vld [vmem:[#allocation5 + $0x98] sm:$0xff]
    %v118 = vld [vmem:[#allocation5 + $0xa0] sm:$0xff]
    %v119 = vld [vmem:[#allocation5 + $0xa8] sm:$0xff]
    %v120 = vld [vmem:[#allocation5 + $0xb0] sm:$0xff]
    %v121 = vld [vmem:[#allocation5 + $0xb8] sm:$0xff]
    %v122 = vld [vmem:[#allocation5 + $0xc0] sm:$0xff]
    %v123 = vld [vmem:[#allocation5 + $0xc8] sm:$0xff]
    %v124 = vld [vmem:[#allocation5 + $0xd0] sm:$0xff]
    %v125 = vld [vmem:[#allocation5 + $0xd8] sm:$0xff]
    %v126 = vld [vmem:[#allocation5 + $0xe0] sm:$0xff]
    %v127 = vld [vmem:[#allocation5 + $0xe8] sm:$0xff]
    %v128 = vld [vmem:[#allocation5 + $0xf0] sm:$0xff]
    %v129 = vld [vmem:[#allocation5 + $0xf8] sm:$0xff]
    %v130 = vld [vmem:[%s2] sm:$0x1]
    %v132 = vlaneseq
    %v133 = vshrl.u32 %v132, 7
    %v134 = vsub.s32 0, %v133
    %v135 = vrot.slane %v130, %v134
    %137 = vmatprep.subr.mxu0 0.0
    %138 = vmatpush1.msra.mxu0 %v98
    %139 = vmatprep.subr.mxu0 0.0
    %140 = vmatpush1.msra.mxu0 %v99
    %141 = vmatprep.subr.mxu0 0.0
    %142 = vmatpush1.msra.mxu0 %v100
    %143 = vmatprep.subr.mxu0 0.0
    %144 = vmatpush1.msra.mxu0 %v101
    %145 = vmatprep.subr.mxu0 0.0
    %146 = vmatpush1.msra.mxu0 %v102
    %147 = vmatprep.subr.mxu0 0.0
    %148 = vmatpush1.msra.mxu0 %v103
    %149 = vmatprep.subr.mxu0 0.0
    %150 = vmatpush1.msra.mxu0 %v104
    %151 = vmatprep.subr.mxu0 0.0
    %152 = vmatpush1.msra.mxu0 %v105
    %153 = vmatprep.subr.mxu0 0.0
    %154 = vmatpush1.msra.mxu0 %v106
    %155 = vmatprep.subr.mxu0 0.0
    %156 = vmatpush1.msra.mxu0 %v107
    %157 = vmatprep.subr.mxu0 0.0
    %158 = vmatpush1.msra.mxu0 %v108
    %159 = vmatprep.subr.mxu0 0.0
    %160 = vmatpush1.msra.mxu0 %v109
    %161 = vmatprep.subr.mxu0 0.0
    %162 = vmatpush1.msra.mxu0 %v110
    %163 = vmatprep.subr.mxu0 0.0
    %164 = vmatpush1.msra.mxu0 %v111
    %165 = vmatprep.subr.mxu0 0.0
    %166 = vmatpush1.msra.mxu0 %v112
    %167 = vmatprep.subr.mxu0 0.0
    %168 = vmatpush1.msra.mxu0 %v113
    %169 = vmatprep.subr.mxu0 0.0
    %170 = vmatpush1.msra.mxu0 %v114
    %171 = vmatprep.subr.mxu0 0.0
    %172 = vmatpush1.msra.mxu0 %v115
    %173 = vmatprep.subr.mxu0 0.0
    %174 = vmatpush1.msra.mxu0 %v116
    %175 = vmatprep.subr.mxu0 0.0
    %176 = vmatpush1.msra.mxu0 %v117
    %177 = vmatprep.subr.mxu0 0.0
    %178 = vmatpush1.msra.mxu0 %v118
    %179 = vmatprep.subr.mxu0 0.0
    %180 = vmatpush1.msra.mxu0 %v119
    %181 = vmatprep.subr.mxu0 0.0
    %182 = vmatpush1.msra.mxu0 %v120
    %183 = vmatprep.subr.mxu0 0.0
    %184 = vmatpush1.msra.mxu0 %v121
    %185 = vmatprep.subr.mxu0 0.0
    %186 = vmatpush1.msra.mxu0 %v122
    %187 = vmatprep.subr.mxu0 0.0
    %188 = vmatpush1.msra.mxu0 %v123
    %189 = vmatprep.subr.mxu0 0.0
    %190 = vmatpush1.msra.mxu0 %v124
    %191 = vmatprep.subr.mxu0 0.0
    %192 = vmatpush1.msra.mxu0 %v125
    %193 = vmatprep.subr.mxu0 0.0
    %194 = vmatpush1.msra.mxu0 %v126
    %195 = vmatprep.subr.mxu0 0.0
    %196 = vmatpush1.msra.mxu0 %v127
    %197 = vmatprep.subr.mxu0 0.0
    %198 = vmatpush1.msra.mxu0 %v128
    %199 = vmatprep.subr.mxu0 0.0
    %200 = vmatpush1.msra.mxu0 %v129
    %201 = vmatprep.mubr.f32.mxu0 %v97
    %202 = vmatmul.mubr.f32.gmra.mrb[0].mxu0 %v96
    %v203 = vpop.f32.mrb[0].mxu0
    %v204 = vadd.f32 %v135, %v203
    %v205 = vpop.f32.mrb[0].mxu0
    %206 = vdwg.mxu0
    %vm207 = vcmp.ge.f32.partialorder %v204, 0.0
    %v208 = vmul.f32 %v204, 0.01
    %v209 = vsel %vm207, %v204, %v208
    %v210 = vld [vmem:[#allocation7] sm:$0xff]
    %v211 = vld [vmem:[#allocation7 + $0x8] sm:$0xff]
    %v212 = vld [vmem:[#allocation7 + $0x10] sm:$0xff]
    %v213 = vld [vmem:[#allocation7 + $0x18] sm:$0xff]
    %v214 = vld [vmem:[#allocation7 + $0x20] sm:$0xff]
    %v215 = vld [vmem:[#allocation7 + $0x28] sm:$0xff]
    %v216 = vld [vmem:[#allocation7 + $0x30] sm:$0xff]
    %v217 = vld [vmem:[#allocation7 + $0x38] sm:$0xff]
    %v218 = vld [vmem:[#allocation7 + $0x40] sm:$0xff]
    %v219 = vld [vmem:[#allocation7 + $0x48] sm:$0xff]
    %v220 = vld [vmem:[#allocation7 + $0x50] sm:$0xff]
    %v221 = vld [vmem:[#allocation7 + $0x58] sm:$0xff]
    %v222 = vld [vmem:[#allocation7 + $0x60] sm:$0xff]
    %v223 = vld [vmem:[#allocation7 + $0x68] sm:$0xff]
    %v224 = vld [vmem:[#allocation7 + $0x70] sm:$0xff]
    %v225 = vld [vmem:[#allocation7 + $0x78] sm:$0xff]
    %v226 = vld [vmem:[%s4] sm:$0x1]
    %v228 = vlaneseq
    %v229 = vshrl.u32 %v228, 7
    %v230 = vsub.s32 0, %v229
    %v231 = vrot.slane %v226, %v230
    %233 = vmatprep.subr.mxu0 0.0
    %234 = vmatpush1.msra.mxu0 %v210
    %235 = vmatprep.subr.mxu0 0.0
    %236 = vmatpush1.msra.mxu0 %v211
    %237 = vmatprep.subr.mxu0 0.0
    %238 = vmatpush1.msra.mxu0 %v212
    %239 = vmatprep.subr.mxu0 0.0
    %240 = vmatpush1.msra.mxu0 %v213
    %241 = vmatprep.subr.mxu0 0.0
    %242 = vmatpush1.msra.mxu0 %v214
    %243 = vmatprep.subr.mxu0 0.0
    %244 = vmatpush1.msra.mxu0 %v215
    %245 = vmatprep.subr.mxu0 0.0
    %246 = vmatpush1.msra.mxu0 %v216
    %247 = vmatprep.subr.mxu0 0.0
    %248 = vmatpush1.msra.mxu0 %v217
    %249 = vmatprep.subr.mxu0 0.0
    %250 = vmatpush1.msra.mxu0 %v218
    %251 = vmatprep.subr.mxu0 0.0
    %252 = vmatpush1.msra.mxu0 %v219
    %253 = vmatprep.subr.mxu0 0.0
    %254 = vmatpush1.msra.mxu0 %v220
    %255 = vmatprep.subr.mxu0 0.0
    %256 = vmatpush1.msra.mxu0 %v221
    %257 = vmatprep.subr.mxu0 0.0
    %258 = vmatpush1.msra.mxu0 %v222
    %259 = vmatprep.subr.mxu0 0.0
    %260 = vmatpush1.msra.mxu0 %v223
    %261 = vmatprep.subr.mxu0 0.0
    %262 = vmatpush1.msra.mxu0 %v224
    %263 = vmatprep.subr.mxu0 0.0
    %264 = vmatpush1.msra.mxu0 %v225
    %265 = vmatprep.subr.mxu0 0.0
    %266 = vmatpush1.msra.mxu0 0.0
    %267 = vmatprep.subr.mxu0 0.0
    %268 = vmatpush1.msra.mxu0 0.0
    %269 = vmatprep.subr.mxu0 0.0
    %270 = vmatpush1.msra.mxu0 0.0
    %271 = vmatprep.subr.mxu0 0.0
    %272 = vmatpush1.msra.mxu0 0.0
    %273 = vmatprep.subr.mxu0 0.0
    %274 = vmatpush1.msra.mxu0 0.0
    %275 = vmatprep.subr.mxu0 0.0
    %276 = vmatpush1.msra.mxu0 0.0
    %277 = vmatprep.subr.mxu0 0.0
    %278 = vmatpush1.msra.mxu0 0.0
    %279 = vmatprep.subr.mxu0 0.0
    %280 = vmatpush1.msra.mxu0 0.0
    %281 = vmatprep.subr.mxu0 0.0
    %282 = vmatpush1.msra.mxu0 0.0
    %283 = vmatprep.subr.mxu0 0.0
    %284 = vmatpush1.msra.mxu0 0.0
    %285 = vmatprep.subr.mxu0 0.0
    %286 = vmatpush1.msra.mxu0 0.0
    %287 = vmatprep.subr.mxu0 0.0
    %288 = vmatpush1.msra.mxu0 0.0
    %289 = vmatprep.subr.mxu0 0.0
    %290 = vmatpush1.msra.mxu0 0.0
    %291 = vmatprep.subr.mxu0 0.0
    %292 = vmatpush1.msra.mxu0 0.0
    %293 = vmatprep.subr.mxu0 0.0
    %294 = vmatpush1.msra.mxu0 0.0
    %295 = vmatprep.subr.mxu0 0.0
    %296 = vmatpush1.msra.mxu0 0.0
    %297 = vmatprep.mubr.f32.mxu0 0.0
    %298 = vmatmul.mubr.f32.gmra.mrb[0].mxu0 %v209
    %v299 = vpop.f32.mrb[0].mxu0
    %v300 = vadd.f32 %v231, %v299
    %v301 = vpop.f32.mrb[0].mxu0
    %302 = vdwg.mxu0
    %vm303 = vcmp.ge.f32.partialorder %v300, 0.0
    %v304 = vmul.f32 %v300, 0.01
    %v305 = vsel %vm303, %v300, %v304
    %306 = vst [vmem:[#allocation11] sm:$0xff] %v305
    %v307 = vld [vmem:[#allocation8] sm:$0xff]
    %v308 = vld [vmem:[#allocation8 + $0x8] sm:$0xff]
    %v309 = vld [vmem:[#allocation8 + $0x10] sm:$0xff]
    %v310 = vld [vmem:[#allocation8 + $0x18] sm:$0xff]
    %v311 = vld [vmem:[#allocation8 + $0x20] sm:$0xff]
    %v312 = vld [vmem:[#allocation8 + $0x28] sm:$0xff]
    %v313 = vld [vmem:[#allocation8 + $0x30] sm:$0xff]
    %v314 = vld [vmem:[#allocation8 + $0x38] sm:$0xff]
    %v315 = vld [vmem:[#allocation8 + $0x40] sm:$0xff]
    %v316 = vld [vmem:[#allocation8 + $0x48] sm:$0xff]
    %v317 = vld [vmem:[#allocation8 + $0x50] sm:$0xff]
    %v318 = vld [vmem:[#allocation8 + $0x58] sm:$0xff]
    %v319 = vld [vmem:[#allocation8 + $0x60] sm:$0xff]
    %v320 = vld [vmem:[#allocation8 + $0x68] sm:$0xff]
    %v321 = vld [vmem:[#allocation8 + $0x70] sm:$0xff]
    %v322 = vld [vmem:[#allocation8 + $0x78] sm:$0xff]
    %v323 = vld [vmem:[#allocation10] sm:$0xff]
    %v324 = vld [vmem:[#allocation10 + $0x8] sm:$0xff]
    %v325 = vld [vmem:[#allocation10 + $0x10] sm:$0xff]
    %v326 = vld [vmem:[#allocation10 + $0x18] sm:$0xff]
    %v327 = vld [vmem:[#allocation10 + $0x20] sm:$0xff]
    %v328 = vld [vmem:[#allocation10 + $0x28] sm:$0xff]
    %v329 = vld [vmem:[#allocation10 + $0x30] sm:$0xff]
    %v330 = vld [vmem:[#allocation10 + $0x38] sm:$0xff]
    %v331 = vld [vmem:[#allocation10 + $0x40] sm:$0xff]
    %v332 = vld [vmem:[#allocation10 + $0x48] sm:$0xff]
    %v333 = vld [vmem:[#allocation10 + $0x50] sm:$0xff]
    %v334 = vld [vmem:[#allocation10 + $0x58] sm:$0xff]
    %v335 = vld [vmem:[#allocation10 + $0x60] sm:$0xff]
    %v336 = vld [vmem:[#allocation10 + $0x68] sm:$0xff]
    %v337 = vld [vmem:[#allocation10 + $0x70] sm:$0xff]
    %v338 = vld [vmem:[#allocation10 + $0x78] sm:$0xff]
    %v339 = vld [vmem:[#allocation10 + $0x80] sm:$0xff]
    %v340 = vld [vmem:[#allocation10 + $0x88] sm:$0xff]
    %v341 = vld [vmem:[#allocation10 + $0x90] sm:$0xff]
    %v342 = vld [vmem:[#allocation10 + $0x98] sm:$0xff]
    %v343 = vld [vmem:[#allocation10 + $0xa0] sm:$0xff]
    %v344 = vld [vmem:[#allocation10 + $0xa8] sm:$0xff]
    %v345 = vld [vmem:[#allocation10 + $0xb0] sm:$0xff]
    %v346 = vld [vmem:[#allocation10 + $0xb8] sm:$0xff]
    %v347 = vld [vmem:[#allocation10 + $0xc0] sm:$0xff]
    %v348 = vld [vmem:[#allocation10 + $0xc8] sm:$0xff]
    %v349 = vld [vmem:[#allocation10 + $0xd0] sm:$0xff]
    %v350 = vld [vmem:[#allocation10 + $0xd8] sm:$0xff]
    %v351 = vld [vmem:[#allocation10 + $0xe0] sm:$0xff]
    %v352 = vld [vmem:[#allocation10 + $0xe8] sm:$0xff]
    %v353 = vld [vmem:[#allocation10 + $0xf0] sm:$0xff]
    %v354 = vld [vmem:[#allocation10 + $0xf8] sm:$0xff]
    %355 = vmatprep.subr.mxu0 %v324
    %356 = vmatpush1.msra.mxu0 %v323
    %357 = vmatprep.subr.mxu0 %v326
    %358 = vmatpush1.msra.mxu0 %v325
    %359 = vmatprep.subr.mxu0 %v328
    %360 = vmatpush1.msra.mxu0 %v327
    %361 = vmatprep.subr.mxu0 %v330
    %362 = vmatpush1.msra.mxu0 %v329
    %363 = vmatprep.subr.mxu0 %v332
    %364 = vmatpush1.msra.mxu0 %v331
    %365 = vmatprep.subr.mxu0 %v334
    %366 = vmatpush1.msra.mxu0 %v333
    %367 = vmatprep.subr.mxu0 %v336
    %368 = vmatpush1.msra.mxu0 %v335
    %369 = vmatprep.subr.mxu0 %v338
    %370 = vmatpush1.msra.mxu0 %v337
    %371 = vmatprep.subr.mxu0 %v340
    %372 = vmatpush1.msra.mxu0 %v339
    %373 = vmatprep.subr.mxu0 %v342
    %374 = vmatpush1.msra.mxu0 %v341
    %375 = vmatprep.subr.mxu0 %v344
    %376 = vmatpush1.msra.mxu0 %v343
    %377 = vmatprep.subr.mxu0 %v346
    %378 = vmatpush1.msra.mxu0 %v345
    %379 = vmatprep.subr.mxu0 %v348
    %380 = vmatpush1.msra.mxu0 %v347
    %381 = vmatprep.subr.mxu0 %v350
    %382 = vmatpush1.msra.mxu0 %v349
    %383 = vmatprep.subr.mxu0 %v352
    %384 = vmatpush1.msra.mxu0 %v351
    %385 = vmatprep.subr.mxu0 %v354
    %386 = vmatpush1.msra.mxu0 %v353
    %387 = vmatprep.subr.mxu0 0.0
    %388 = vmatpush1.msra.mxu0 0.0
    %389 = vmatprep.subr.mxu0 0.0
    %390 = vmatpush1.msra.mxu0 0.0
    %391 = vmatprep.subr.mxu0 0.0
    %392 = vmatpush1.msra.mxu0 0.0
    %393 = vmatprep.subr.mxu0 0.0
    %394 = vmatpush1.msra.mxu0 0.0
    %395 = vmatprep.subr.mxu0 0.0
    %396 = vmatpush1.msra.mxu0 0.0
    %397 = vmatprep.subr.mxu0 0.0
    %398 = vmatpush1.msra.mxu0 0.0
    %399 = vmatprep.subr.mxu0 0.0
    %400 = vmatpush1.msra.mxu0 0.0
    %401 = vmatprep.subr.mxu0 0.0
    %402 = vmatpush1.msra.mxu0 0.0
    %403 = vmatprep.subr.mxu0 0.0
    %404 = vmatpush1.msra.mxu0 0.0
    %405 = vmatprep.subr.mxu0 0.0
    %406 = vmatpush1.msra.mxu0 0.0
    %407 = vmatprep.subr.mxu0 0.0
    %408 = vmatpush1.msra.mxu0 0.0
    %409 = vmatprep.subr.mxu0 0.0
    %410 = vmatpush1.msra.mxu0 0.0
    %411 = vmatprep.subr.mxu0 0.0
    %412 = vmatpush1.msra.mxu0 0.0
    %413 = vmatprep.subr.mxu0 0.0
    %414 = vmatpush1.msra.mxu0 0.0
    %415 = vmatprep.subr.mxu0 0.0
    %416 = vmatpush1.msra.mxu0 0.0
    %417 = vmatprep.subr.mxu0 0.0
    %418 = vmatpush1.msra.mxu0 0.0
    %419 = vmatprep.mubr.f32.mxu0 0.0
    %420 = vmatmul.mubr.f32.gmra.mrb[0].mxu0 %v307
    %v421 = vpop.f32.mrb[0].mxu0
    %v422 = vadd.f32 0.0, %v421
    %v423 = vpop.f32.mrb[0].mxu0
    %v424 = vadd.f32 0.0, %v423
    %425 = vmatprep.mubr.f32.mxu0 0.0
    %426 = vmatmul.mubr.f32.gmra.mrb[0].mxu0 %v308
    %v427 = vpop.f32.mrb[0].mxu0
    %v428 = vadd.f32 0.0, %v427
    %v429 = vpop.f32.mrb[0].mxu0
    %v430 = vadd.f32 0.0, %v429
    %431 = vmatprep.mubr.f32.mxu0 0.0
    %432 = vmatmul.mubr.f32.gmra.mrb[0].mxu0 %v309
    %v433 = vpop.f32.mrb[0].mxu0
    %v434 = vadd.f32 0.0, %v433
    %v435 = vpop.f32.mrb[0].mxu0
    %v436 = vadd.f32 0.0, %v435
    %437 = vmatprep.mubr.f32.mxu0 0.0
    %438 = vmatmul.mubr.f32.gmra.mrb[0].mxu0 %v310
    %v439 = vpop.f32.mrb[0].mxu0
    %v440 = vadd.f32 0.0, %v439
    %v441 = vpop.f32.mrb[0].mxu0
    %v442 = vadd.f32 0.0, %v441
    %443 = vmatprep.mubr.f32.mxu0 0.0
    %444 = vmatmul.mubr.f32.gmra.mrb[0].mxu0 %v311
    %v445 = vpop.f32.mrb[0].mxu0
    %v446 = vadd.f32 0.0, %v445
    %v447 = vpop.f32.mrb[0].mxu0
    %v448 = vadd.f32 0.0, %v447
    %449 = vmatprep.mubr.f32.mxu0 0.0
    %450 = vmatmul.mubr.f32.gmra.mrb[0].mxu0 %v312
    %v451 = vpop.f32.mrb[0].mxu0
    %v452 = vadd.f32 0.0, %v451
    %v453 = vpop.f32.mrb[0].mxu0
    %v454 = vadd.f32 0.0, %v453
    %455 = vmatprep.mubr.f32.mxu0 0.0
    %456 = vmatmul.mubr.f32.gmra.mrb[0].mxu0 %v313
    %v457 = vpop.f32.mrb[0].mxu0
    %v458 = vadd.f32 0.0, %v457
    %v459 = vpop.f32.mrb[0].mxu0
    %v460 = vadd.f32 0.0, %v459
    %461 = vmatprep.mubr.f32.mxu0 0.0
    %462 = vmatmul.mubr.f32.gmra.mrb[0].mxu0 %v314
    %v463 = vpop.f32.mrb[0].mxu0
    %v464 = vadd.f32 0.0, %v463
    %v465 = vpop.f32.mrb[0].mxu0
    %v466 = vadd.f32 0.0, %v465
    %467 = vmatprep.mubr.f32.mxu0 0.0
    %468 = vmatmul.mubr.f32.gmra.mrb[0].mxu0 %v315
    %v469 = vpop.f32.mrb[0].mxu0
    %v470 = vadd.f32 0.0, %v469
    %v471 = vpop.f32.mrb[0].mxu0
    %v472 = vadd.f32 0.0, %v471
    %473 = vmatprep.mubr.f32.mxu0 0.0
    %474 = vmatmul.mubr.f32.gmra.mrb[0].mxu0 %v316
    %v475 = vpop.f32.mrb[0].mxu0
    %v476 = vadd.f32 0.0, %v475
    %v477 = vpop.f32.mrb[0].mxu0
    %v478 = vadd.f32 0.0, %v477
    %479 = vmatprep.mubr.f32.mxu0 0.0
    %480 = vmatmul.mubr.f32.gmra.mrb[0].mxu0 %v317
    %v481 = vpop.f32.mrb[0].mxu0
    %v482 = vadd.f32 0.0, %v481
    %v483 = vpop.f32.mrb[0].mxu0
    %v484 = vadd.f32 0.0, %v483
    %485 = vmatprep.mubr.f32.mxu0 0.0
    %486 = vmatmul.mubr.f32.gmra.mrb[0].mxu0 %v318
    %v487 = vpop.f32.mrb[0].mxu0
    %v488 = vadd.f32 0.0, %v487
    %v489 = vpop.f32.mrb[0].mxu0
    %v490 = vadd.f32 0.0, %v489
    %491 = vmatprep.mubr.f32.mxu0 0.0
    %492 = vmatmul.mubr.f32.gmra.mrb[0].mxu0 %v319
    %v493 = vpop.f32.mrb[0].mxu0
    %v494 = vadd.f32 0.0, %v493
    %v495 = vpop.f32.mrb[0].mxu0
    %v496 = vadd.f32 0.0, %v495
    %497 = vmatprep.mubr.f32.mxu0 0.0
    %498 = vmatmul.mubr.f32.gmra.mrb[0].mxu0 %v320
    %v499 = vpop.f32.mrb[0].mxu0
    %v500 = vadd.f32 0.0, %v499
    %v501 = vpop.f32.mrb[0].mxu0
    %v502 = vadd.f32 0.0, %v501
    %503 = vmatprep.mubr.f32.mxu0 0.0
    %504 = vmatmul.mubr.f32.gmra.mrb[0].mxu0 %v321
    %v505 = vpop.f32.mrb[0].mxu0
    %v506 = vadd.f32 0.0, %v505
    %v507 = vpop.f32.mrb[0].mxu0
    %v508 = vadd.f32 0.0, %v507
    %509 = vmatprep.mubr.f32.mxu0 0.0
    %510 = vmatmul.mubr.f32.gmra.mrb[0].mxu0 %v322
    %v511 = vpop.f32.mrb[0].mxu0
    %v512 = vadd.f32 0.0, %v511
    %v513 = vpop.f32.mrb[0].mxu0
    %v514 = vadd.f32 0.0, %v513
    %515 = vdwg.mxu0
    %516 = vst [vmem:[#allocation12] sm:$0xff] %v422
    %517 = vst [vmem:[#allocation12 + $0x8] sm:$0xff] %v424
    %518 = vst [vmem:[#allocation12 + $0x10] sm:$0xff] %v428
    %519 = vst [vmem:[#allocation12 + $0x18] sm:$0xff] %v430
    %520 = vst [vmem:[#allocation12 + $0x20] sm:$0xff] %v434
    %521 = vst [vmem:[#allocation12 + $0x28] sm:$0xff] %v436
    %522 = vst [vmem:[#allocation12 + $0x30] sm:$0xff] %v440
    %523 = vst [vmem:[#allocation12 + $0x38] sm:$0xff] %v442
    %524 = vst [vmem:[#allocation12 + $0x40] sm:$0xff] %v446
    %525 = vst [vmem:[#allocation12 + $0x48] sm:$0xff] %v448
    %526 = vst [vmem:[#allocation12 + $0x50] sm:$0xff] %v452
    %527 = vst [vmem:[#allocation12 + $0x58] sm:$0xff] %v454
    %528 = vst [vmem:[#allocation12 + $0x60] sm:$0xff] %v458
    %529 = vst [vmem:[#allocation12 + $0x68] sm:$0xff] %v460
    %530 = vst [vmem:[#allocation12 + $0x70] sm:$0xff] %v464
    %531 = vst [vmem:[#allocation12 + $0x78] sm:$0xff] %v466
    %532 = vst [vmem:[#allocation12 + $0x80] sm:$0xff] %v470
    %533 = vst [vmem:[#allocation12 + $0x88] sm:$0xff] %v472
    %534 = vst [vmem:[#allocation12 + $0x90] sm:$0xff] %v476
    %535 = vst [vmem:[#allocation12 + $0x98] sm:$0xff] %v478
    %536 = vst [vmem:[#allocation12 + $0xa0] sm:$0xff] %v482
    %537 = vst [vmem:[#allocation12 + $0xa8] sm:$0xff] %v484
    %538 = vst [vmem:[#allocation12 + $0xb0] sm:$0xff] %v488
    %539 = vst [vmem:[#allocation12 + $0xb8] sm:$0xff] %v490
    %540 = vst [vmem:[#allocation12 + $0xc0] sm:$0xff] %v494
    %541 = vst [vmem:[#allocation12 + $0xc8] sm:$0xff] %v496
    %542 = vst [vmem:[#allocation12 + $0xd0] sm:$0xff] %v500
    %543 = vst [vmem:[#allocation12 + $0xd8] sm:$0xff] %v502
    %544 = vst [vmem:[#allocation12 + $0xe0] sm:$0xff] %v506
    %545 = vst [vmem:[#allocation12 + $0xe8] sm:$0xff] %v508
    %546 = vst [vmem:[#allocation12 + $0xf0] sm:$0xff] %v512
    %547 = vst [vmem:[#allocation12 + $0xf8] sm:$0xff] %v514
    // Predicated region
    $region50: #{tpu_custom_call.1} parent=1 // pred_check
      _
    $region51: #{tpu_custom_call.1} parent=1 // pred_check_branch
      %549 = sbr.rel (0) target = $region53
    $region52: #{tpu_custom_call.1} parent=1 // pred_region
      %s551 = ssub.s32 128, 128
      %552 = vsyncadd [#allocation4], %s551
      %s554 = sshll.u32 [#allocation11], 4
      %s555 = int_to_ptr.vmem [resolvable:$true] %s554
      %557 = dma.vmem_to_hbm [thread:$0]  %s555, 128, %s7, [#allocation4]
    $region53: #{tpu_custom_call.1} parent=1 // pred_fallthru
      _
    // Predicated region
    $region54: #{tpu_custom_call.1} parent=1 // pred_check
      _
    $region55: #{tpu_custom_call.1} parent=1 // pred_check_branch
      %559 = sbr.rel (0) target = $region57
    $region56: #{tpu_custom_call.1} parent=1 // pred_region
      %s561 = ssub.s32 4096, 4096
      %562 = vsyncadd [#allocation13], %s561
      %s563 = sshll.u32 [#allocation12], 4
      %s564 = int_to_ptr.vmem [resolvable:$true] %s563
      %569 = dma.vmem_to_hbm [thread:$0]  %s564, 4096, %s8, [#allocation13], 256, 256, 16
    $region57: #{tpu_custom_call.1} parent=1 // pred_fallthru
      _
    // Predicated region
    $region58: #{tpu_custom_call.1} parent=1 // pred_check
      _
    $region59: #{tpu_custom_call.1} parent=1 // pred_check_branch
      %571 = sbr.rel (0) target = $region61
    $region60: #{tpu_custom_call.1} parent=1 // pred_region
      %572 = dma.done [#allocation4], 128
    $region61: #{tpu_custom_call.1} parent=1 // pred_fallthru
      _
    // Predicated region
    $region62: #{tpu_custom_call.1} parent=1 // pred_check
      _
    $region63: #{tpu_custom_call.1} parent=1 // pred_check_branch
      %574 = sbr.rel (0) target = $region65
    $region64: #{tpu_custom_call.1} parent=1 // pred_region
      %575 = dma.done [#allocation13], 4096
    $region65: #{tpu_custom_call.1} parent=1 // pred_fallthru
      _
    %576 = vsyncpa [#allocation3], 1
    %577 = vsyncpa [#allocation6], 1
    %578 = vsyncpa [#allocation9], 1
    %579 = vsyncpa [#allocation4], 1
    %580 = vsyncpa [#allocation13], 1

</llo_original>
